<compile_context>
chip_gen: v7x
topology: tpu7x:2x2x1
jax: 0.10.0
libtpu: 0.0.40
codegen_flags: <defaults>
</compile_context>

<pallas_src>
import functools

import jax
import jax.numpy as jnp
from jax.experimental import pallas as pl
from jax.experimental.pallas import tpu as pltpu

_COLS = 8 * 128                 # 1024-wide lane-dense slab (unmasked vector stores)
_TILE_BYTES = 4 * 1024 * 1024   # ~4 MiB per tile -> ~16 MiB double-buffered in+out
_VMEM_LIMIT = 32 * 1024 * 1024  # explicit scoped-VMEM raise (v5e default is 16 MiB)


def _round_up(a: int, b: int) -> int:
    return ((a + b - 1) // b) * b


def _round_down(a: int, b: int) -> int:
    return (a // b) * b


def _telu_kernel(x_ref, o_ref, *, alpha):
    x = x_ref[...]
    # Negative branch in f32 (matches torch exp(x)-1), single cast at the select.
    neg = (alpha * (jnp.exp(x.astype(jnp.float32)) - 1.0)).astype(x.dtype)
    o_ref[...] = jnp.where(x >= 0, x, neg)


def _telu_slab(x2d: jax.Array, alpha: float) -> jax.Array:
    """TeLU over a 2D slab. Handles both the (rows, 1024) bulk and tiny tails."""
    rows, cols = x2d.shape
    dtype = x2d.dtype
    itemsize = jnp.dtype(dtype).itemsize

    # Sublane packing granularity: 8 rows for f32, 16 for bf16, 32 for 8-bit.
    row_align = 8 * max(1, 4 // itemsize)

    # ~4 MiB tiles, kept aligned; for bf16 this doubles the row count so the DMA
    # chunk size (bytes) stays the same as for f32.
    max_tile_rows = max(row_align, _round_down(_TILE_BYTES // (cols * itemsize),
                                               row_align))

    if rows <= row_align:
        tile_r = rows                              # full-extent block, grid=(1,)
    elif rows <= 2 * max_tile_rows:
        # Aim for >= 2 balanced grid steps so both v7x TensorCores get work.
        tile_r = min(_round_up(pl.cdiv(rows, 2), row_align), rows)
    else:
        tile_r = max_tile_rows

    grid = (pl.cdiv(rows, tile_r),)
    n_elems = rows * cols
    cost = pl.CostEstimate(
        flops=3 * n_elems,          # compare + mul + sub
        transcendentals=n_elems,    # one exp per element
        bytes_accessed=2 * n_elems * itemsize,
    )

    return pl.pallas_call(
        functools.partial(_telu_kernel, alpha=float(alpha)),
        out_shape=jax.ShapeDtypeStruct((rows, cols), dtype),
        grid=grid,
        in_specs=[pl.BlockSpec((tile_r, cols), lambda i: (i, 0))],
        out_specs=pl.BlockSpec((tile_r, cols), lambda i: (i, 0)),
        compiler_params=pltpu.CompilerParams(
            dimension_semantics=("parallel",),
            vmem_limit_bytes=_VMEM_LIMIT,
        ),
        cost_estimate=cost,
    )(x2d)


def telu(x: jax.Array, alpha: float = 0.15) -> jax.Array:
    """TeLU forward: matches torch.where(x >= 0, x, alpha*(exp(x)-1))."""
    orig_shape = x.shape
    flat = x.reshape(-1)
    n = flat.shape[0]
    if n == 0:
        return x

    bulk = (n // _COLS) * _COLS
    tail = n - bulk

    pieces = []
    if bulk:
        out_bulk = _telu_slab(flat[:bulk].reshape(bulk // _COLS, _COLS), alpha)
        pieces.append(out_bulk.reshape(-1))
    if tail:
        # Ragged tail (< 1024 elems): single full-extent (1, tail) block — no pad.
        out_tail = _telu_slab(flat[bulk:].reshape(1, tail), alpha)
        pieces.append(out_tail.reshape(-1))

    out_flat = pieces[0] if len(pieces) == 1 else jnp.concatenate(pieces)
    return out_flat.reshape(orig_shape)


if __name__ == "__main__":
    alpha = 0.15

    # Small NCHW input consistent with how TeLU is used inside a conv net.
    # 2*4*16*16 = 2048 elements -> exercises the aligned (rows, 1024) bulk path.
    x = jax.random.normal(jax.random.PRNGKey(0), (2, 4, 16, 16), dtype=jnp.float32)
    out = jax.block_until_ready(telu(x, alpha=alpha))
    ref = jnp.where(x >= 0, x, alpha * (jnp.exp(x) - 1.0))
    assert out.shape == x.shape and out.dtype == x.dtype
    assert jnp.allclose(out, ref, atol=1e-6, rtol=1e-6)

    # Odd size (2*3*7*7 = 294 elements) -> exercises the ragged-tail path.
    x2 = jax.random.normal(jax.random.PRNGKey(1), (2, 3, 7, 7), dtype=jnp.float32)
    out2 = jax.block_until_ready(telu(x2, alpha=alpha))
    ref2 = jnp.where(x2 >= 0, x2, alpha * (jnp.exp(x2) - 1.0))
    assert out2.shape == x2.shape and out2.dtype == x2.dtype
    assert jnp.allclose(out2, ref2, atol=1e-6, rtol=1e-6)

    # Misaligned "large-ish" size (5000 elems): bulk (4 rows) + tail (904 elems).
    x3 = jax.random.normal(jax.random.PRNGKey(2), (5000,), dtype=jnp.float32)
    out3 = jax.block_until_ready(telu(x3, alpha=alpha))
    ref3 = jnp.where(x3 >= 0, x3, alpha * (jnp.exp(x3) - 1.0))
    assert jnp.allclose(out3, ref3, atol=1e-6, rtol=1e-6)

    print("KERNEL_OK")
</pallas_src>

<mosaic_0001>
module attributes {stable_mosaic.version = 11 : i64} {
  func.func @_telu_kernel(%arg0: i32, %arg1: memref<2x1024xf32, #tpu.memory_space<vmem>>, %arg2: memref<2x1024xf32, #tpu.memory_space<vmem>>) attributes {dimension_semantics = [#tpu.dimension_semantics<parallel>], iteration_bounds = array<i64: 1>, scalar_prefetch = 0 : i64, scratch_operands = 0 : i64, tpu.core_type = #tpu.core_type<tc>, window_params = [{transform_indices = @transform_0, window_bounds = array<i64: 2, 1024>}, {transform_indices = @transform_1, window_bounds = array<i64: 2, 1024>}]} {
    %c0 = arith.constant 0 : index
    %c0_0 = arith.constant 0 : index
    %0 = vector.load %arg1[%c0, %c0_0] : memref<2x1024xf32, #tpu.memory_space<vmem>>, vector<2x1024xf32>
    %1 = math.exp %0 : vector<2x1024xf32>
    %cst = arith.constant 1.000000e+00 : f32
    %2 = vector.broadcast %cst : f32 to vector<2x1024xf32>
    %3 = arith.subf %1, %2 : vector<2x1024xf32>
    %cst_1 = arith.constant 1.500000e-01 : f32
    %4 = vector.broadcast %cst_1 : f32 to vector<2x1024xf32>
    %5 = arith.mulf %4, %3 : vector<2x1024xf32>
    %cst_2 = arith.constant 0.000000e+00 : f32
    %6 = vector.broadcast %cst_2 : f32 to vector<2x1024xf32>
    %7 = arith.cmpf oge, %0, %6 : vector<2x1024xf32>
    %8 = arith.select %7, %0, %5 : vector<2x1024xi1>, vector<2x1024xf32>
    %c0_3 = arith.constant 0 : index
    %c0_4 = arith.constant 0 : index
    %9 = vector.load %arg2[%c0_3, %c0_4] : memref<2x1024xf32, #tpu.memory_space<vmem>>, vector<2x1024xf32>
    tpu.vector_store %arg2[%c0_3, %c0_4], %8 {strides = array<i32>} : memref<2x1024xf32, #tpu.memory_space<vmem>>, vector<2x1024xf32>,
    return
  }
  func.func @transform_0(%arg0: i32) -> (i32, i32) {
    %c0_i32 = arith.constant 0 : i32
    %c0_i32_0 = arith.constant 0 : i32
    return %arg0, %c0_i32 : i32, i32
  }
  func.func @transform_1(%arg0: i32) -> (i32, i32) {
    %c0_i32 = arith.constant 0 : i32
    %c0_i32_0 = arith.constant 0 : i32
    return %arg0, %c0_i32 : i32, i32
  }
}

</mosaic_0001>

<llo_original>
// kernel: tpu_custom_call.1
$region0: #{tpu_custom_call.1}
  #allocation0 [shape = 'u32[]', space=smem, size = 0x4, offset = 0x4, fixed_abs, tag = 'smem constant byte address 0x4 - core index']
  #allocation1 [shape = 'u32[144,128]{1,0:T(1,128)}', space=vmem, size = 0x12000, scoped, tag = 'internal scratch']
  %s0 = inlined_call_operand.hbm [shape: f32[2,1024], index: 0, kind: input, shape index: {}]
  %s1 = inlined_call_operand.hbm [shape: f32[2,1024], index: 1, kind: output, shape index: {}]
  %s2 = sld [smem:[#allocation0]]
  $region18: #{tpu_custom_call.1} parent=0
    _
  %s4 = ssub.s32 1, %s2
  %s5 = scalar_select 0, %s4, %s2
  $region1: #{tpu_custom_call.1} parent=0
    #allocation2 [shape = 'u8[8192]{0}', space=vmem, size = 0x2000, scoped, tag = 'input window, operand 0, single buffered']
    #allocation3 [shape = 's32[1]{0}', space=sflag, size = 0x4, scoped, tag = 'scoped memory for tpu_custom_call.1']
    #allocation4 [shape = 's32[1]{0}', space=sflag, size = 0x4, scoped, tag = 'scoped memory for tpu_custom_call.1']
    #allocation5 [shape = 'u8[8192]{0}', space=vmem, size = 0x2000, scoped, tag = 'output window, operand 0, single buffered']
    %6 = vsyncpa [#allocation3], 0
    %7 = vsyncpa [#allocation4], 0
    // Predicated region
    $region2: #{tpu_custom_call.1} parent=1 // pred_check
      _
    $region3: #{tpu_custom_call.1} parent=1 // pred_check_branch
      %9 = sbr.rel (0) target = $region5
    $region4: #{tpu_custom_call.1} parent=1 // pred_region
      %s11 = ssub.s32 256, 256
      %12 = vsyncadd [#allocation3], %s11
      %s14 = sshll.u32 [#allocation2], 4
      %s15 = int_to_ptr.vmem [resolvable:$true] %s14
      %17 = dma.hbm_to_vmem [thread:$0]  %s0, 256, %s15, [#allocation3]
    $region5: #{tpu_custom_call.1} parent=1 // pred_fallthru
      _
    // Predicated region
    $region6: #{tpu_custom_call.1} parent=1 // pred_check
      _
    $region7: #{tpu_custom_call.1} parent=1 // pred_check_branch
      %19 = sbr.rel (0) target = $region9
    $region8: #{tpu_custom_call.1} parent=1 // pred_region
      %20 = dma.done [#allocation3], 256
    $region9: #{tpu_custom_call.1} parent=1 // pred_fallthru
      _
    %v21 = vld [vmem:[#allocation2] sm:$0xff]
    %v22 = vld [vmem:[#allocation2 + $0x8] sm:$0xff]
    %v23 = vmul.f32 %v21, 1.442695
    %v24 = vpow.pop %v23
    %v25 = vmul.f32 %v22, 1.442695
    %v26 = vpow.pop %v25
    %v27 = vsub.f32 %v24, 1.0
    %v28 = vsub.f32 %v26, 1.0
    %v29 = vmul.f32 %v27, 0.15
    %v30 = vmul.f32 %v28, 0.15
    %vm31 = vcmp.ge.f32.partialorder %v21, 0.0
    %vm32 = vcmp.ge.f32.partialorder %v22, 0.0
    %v33 = vsel %vm31, %v21, %v29
    %v34 = vsel %vm32, %v22, %v30
    %35 = vst [vmem:[#allocation5] sm:$0xff] %v33
    %36 = vst [vmem:[#allocation5 + $0x8] sm:$0xff] %v34
    // Predicated region
    $region10: #{tpu_custom_call.1} parent=1 // pred_check
      _
    $region11: #{tpu_custom_call.1} parent=1 // pred_check_branch
      %38 = sbr.rel (0) target = $region13
    $region12: #{tpu_custom_call.1} parent=1 // pred_region
      %s40 = ssub.s32 256, 256
      %41 = vsyncadd [#allocation4], %s40
      %s43 = sshll.u32 [#allocation5], 4
      %s44 = int_to_ptr.vmem [resolvable:$true] %s43
      %46 = dma.vmem_to_hbm [thread:$0]  %s44, 256, %s1, [#allocation4]
    $region13: #{tpu_custom_call.1} parent=1 // pred_fallthru
      _
    // Predicated region
    $region14: #{tpu_custom_call.1} parent=1 // pred_check
      _
    $region15: #{tpu_custom_call.1} parent=1 // pred_check_branch
      %48 = sbr.rel (0) target = $region17
    $region16: #{tpu_custom_call.1} parent=1 // pred_region
      %49 = dma.done [#allocation4], 256
    $region17: #{tpu_custom_call.1} parent=1 // pred_fallthru
      _
    %50 = vsyncpa [#allocation3], 1
    %51 = vsyncpa [#allocation4], 1

</llo_original>
